<compile_context>
chip_gen: v6e
topology: v6e:2x2x1
jax: 0.10.0
libtpu: 0.0.40
codegen_flags: <defaults>
</compile_context>

<pallas_src>
import functools

import numpy as np
import jax
import jax.numpy as jnp
from jax.experimental import pallas as pl
from jax.experimental.pallas import tpu as pltpu


def _round_up(x, m):
    return ((x + m - 1) // m) * m


@functools.lru_cache(maxsize=None)
def _vmem_limit_bytes():
    cap = 64 * 1024 * 1024  # conservative default (v7x per-TC VMEM)
    try:
        cap = int(pltpu.get_tpu_info().vmem_capacity_bytes)
    except Exception:
        pass
    # v5e/v6e (128 MiB) -> 96 MiB ; v7x (64 MiB) -> 48 MiB
    return int(max(32 * 1024 * 1024, min(cap * 3 // 4, 112 * 1024 * 1024)))


def _cparams(n_axes):
    return pltpu.CompilerParams(
        dimension_semantics=("parallel",) * n_axes,
        vmem_limit_bytes=_vmem_limit_bytes(),
    )


# ----------------------------------------------------------------------------------
# Kernel A: per-head QKV projections, head-leading outputs (n_head, T, d_k/d_v).
# Weights stay VMEM-resident (constant index_map); grid is tiled over tokens.
# ----------------------------------------------------------------------------------
def _qkv_kernel(x_ref, wq_ref, wk_ref, wv_ref, q_ref, k_ref, v_ref):
    x = x_ref[...]
    n_head = wq_ref.shape[0]
    for h in range(n_head):                              # static unroll (n_head small)
        q_ref[h] = jnp.dot(x, wq_ref[h], preferred_element_type=jnp.float32).astype(q_ref.dtype)
        k_ref[h] = jnp.dot(x, wk_ref[h], preferred_element_type=jnp.float32).astype(k_ref.dtype)
        v_ref[h] = jnp.dot(x, wv_ref[h], preferred_element_type=jnp.float32).astype(v_ref.dtype)


def qkv_project(x, w_qs, w_ks, w_vs, *, tm):
    T_pad, d_model = x.shape
    n_head, _, d_k = w_qs.shape
    d_v = w_vs.shape[-1]
    return pl.pallas_call(
        _qkv_kernel,
        grid=(T_pad // tm,),
        in_specs=[
            pl.BlockSpec((tm, d_model), lambda i: (i, 0)),
            pl.BlockSpec((n_head, d_model, d_k), lambda i: (0, 0, 0)),
            pl.BlockSpec((n_head, d_model, d_k), lambda i: (0, 0, 0)),
            pl.BlockSpec((n_head, d_model, d_v), lambda i: (0, 0, 0)),
        ],
        out_specs=(
            pl.BlockSpec((n_head, tm, d_k), lambda i: (0, i, 0)),
            pl.BlockSpec((n_head, tm, d_k), lambda i: (0, i, 0)),
            pl.BlockSpec((n_head, tm, d_v), lambda i: (0, i, 0)),
        ),
        out_shape=(
            jax.ShapeDtypeStruct((n_head, T_pad, d_k), x.dtype),
            jax.ShapeDtypeStruct((n_head, T_pad, d_k), x.dtype),
            jax.ShapeDtypeStruct((n_head, T_pad, d_v), x.dtype),
        ),
        compiler_params=_cparams(1),
    )(x, w_qs, w_ks, w_vs)


# ----------------------------------------------------------------------------------
# Kernel B: ScaledDotProductAttention.  One grid step processes SB sentences x all heads.
#   attn = softmax(QK^T / temper + key_bias);  out = attn @ V
# key_bias is a host-precomputed (mb_pad, 1, Lp) f32 row: 0 on valid keys, -1e30 on padding.
# ----------------------------------------------------------------------------------
def _attn_kernel(q_ref, k_ref, v_ref, b_ref, *out_refs, inv_temper, exp_dtype, with_attn):
    o_ref = out_refs[0]
    a_ref = out_refs[1] if with_attn else None
    bias = b_ref[...]                                    # (SB, 1, Lp) f32
    n_head = q_ref.shape[0]
    for h in range(n_head):                              # static unroll
        qh = q_ref[h]                                    # (SB, Lp, d_k)
        kh = k_ref[h]                                    # (SB, Lp, d_k)
        vh = v_ref[h]                                    # (SB, Lp, d_v)
        s = jnp.einsum("sqd,skd->sqk", qh, kh,
                       preferred_element_type=jnp.float32) * inv_temper + bias
        smax = jnp.max(s, axis=-1, keepdims=True)
        e = jnp.exp((s - smax).astype(exp_dtype)).astype(jnp.float32)
        p = e * pl.reciprocal(jnp.sum(e, axis=-1, keepdims=True), approx=True)
        o = jnp.einsum("sqk,skv->sqv", p.astype(vh.dtype), vh,
                       preferred_element_type=jnp.float32)
        o_ref[h] = o.astype(o_ref.dtype)
        if with_attn:
            a_ref[h] = p.astype(a_ref.dtype)


def scaled_dot_attention(q_pad, k_pad, v_pad, bias, temper, *, sb, with_attn,
                         attn_dtype, exp_dtype):
    n_head, mb_pad, Lp, d_k = q_pad.shape
    d_v = v_pad.shape[-1]
    kernel = functools.partial(
        _attn_kernel,
        inv_temper=1.0 / float(temper),
        exp_dtype=exp_dtype,
        with_attn=with_attn,
    )
    in_specs = [
        pl.BlockSpec((n_head, sb, Lp, d_k), lambda s: (0, s, 0, 0)),
        pl.BlockSpec((n_head, sb, Lp, d_k), lambda s: (0, s, 0, 0)),
        pl.BlockSpec((n_head, sb, Lp, d_v), lambda s: (0, s, 0, 0)),
        pl.BlockSpec((sb, 1, Lp), lambda s: (s, 0, 0)),
    ]
    o_spec = pl.BlockSpec((n_head, sb, Lp, d_v), lambda s: (0, s, 0, 0))
    o_shape = jax.ShapeDtypeStruct((n_head, mb_pad, Lp, d_v), q_pad.dtype)
    if with_attn:
        out_specs = (o_spec, pl.BlockSpec((n_head, sb, Lp, Lp), lambda s: (0, s, 0, 0)))
        out_shape = (o_shape, jax.ShapeDtypeStruct((n_head, mb_pad, Lp, Lp), attn_dtype))
    else:
        out_specs = o_spec
        out_shape = o_shape
    res = pl.pallas_call(
        kernel,
        grid=(mb_pad // sb,),
        in_specs=in_specs,
        out_specs=out_specs,
        out_shape=out_shape,
        compiler_params=_cparams(1),
    )(q_pad, k_pad, v_pad, bias)
    if with_attn:
        return res[0], res[1]
    return res, None


# ----------------------------------------------------------------------------------
# Kernel C: combine_v (per-head projection, summed) + residual + LayerNormalization.
#   y  = sum_h outputs_h @ W_h + residual
#   ln = (y - mean) / (std_unbiased + eps) * gamma + beta   (torch.std unbiased, eps on sigma)
# ----------------------------------------------------------------------------------
def _proj_ln_kernel(o_ref, w_ref, r_ref, g_ref, b_ref, out_ref, *, eps):
    y = r_ref[...].astype(jnp.float32)
    n_head = w_ref.shape[0]
    for h in range(n_head):                              # static unroll
        y = y + jnp.dot(o_ref[h], w_ref[h], preferred_element_type=jnp.float32)
    d = y.shape[-1]
    mu = jnp.mean(y, axis=-1, keepdims=True)
    var = jnp.sum((y - mu) ** 2, axis=-1, keepdims=True) * (1.0 / (d - 1))
    sigma = jnp.sqrt(var)
    out_ref[...] = (y - mu) / (sigma + eps) * g_ref[...] + b_ref[...]


def proj_residual_layernorm(outputs_h, w_proj_h, residual, gamma, beta, *, eps, tm):
    n_head, T_pad, d_v = outputs_h.shape
    d_model = residual.shape[1]
    kernel = functools.partial(_proj_ln_kernel, eps=float(eps))
    return pl.pallas_call(
        kernel,
        grid=(T_pad // tm,),
        in_specs=[
            pl.BlockSpec((n_head, tm, d_v), lambda i: (0, i, 0)),
            pl.BlockSpec((n_head, d_v, d_model), lambda i: (0, 0, 0)),
            pl.BlockSpec((tm, d_model), lambda i: (i, 0)),
            pl.BlockSpec((1, d_model), lambda i: (0, 0)),
            pl.BlockSpec((1, d_model), lambda i: (0, 0)),
        ],
        out_specs=pl.BlockSpec((tm, d_model), lambda i: (i, 0)),
        out_shape=jax.ShapeDtypeStruct((T_pad, d_model), jnp.float32),
        compiler_params=_cparams(1),
    )(outputs_h, w_proj_h, residual, gamma, beta)


# ----------------------------------------------------------------------------------
# Full forward.  Sentence lengths are static host values (like batch_idxs.boundaries_np),
# so pad/unpad index maps and the key bias are built once in numpy.
# ----------------------------------------------------------------------------------
def multi_head_attention(inp, lengths, params, *, n_head, d_k, d_v,
                         use_bf16=True, return_attn=True, tm_tokens=512):
    T, d_model = inp.shape
    mb = len(lengths)
    L = int(max(lengths))
    Lp = _round_up(L, 128)                               # lane-dense score/prob tiles
    temper = float(d_model) ** 0.5
    compute_dtype = jnp.bfloat16 if use_bf16 else jnp.float32
    attn_dtype = jnp.bfloat16 if use_bf16 else jnp.float32

    # Sentence-batch size per attention grid step, bounded by a VMEM budget for the
    # f32 score/prob intermediates; balanced so padding waste is < one group.
    per_sent = n_head * Lp * Lp * 4
    sb_max = int(max(1, min(8, mb, (8 << 20) // max(per_sent, 1))))
    n_groups = -(-mb // sb_max)
    sb = -(-mb // n_groups)
    mb_pad = n_groups * sb

    # ---- Kernel A: per-head QKV projections (head-leading outputs) ----
    tm_a = min(tm_tokens, _round_up(T + 1, 8))
    T_pad_a = _round_up(T + 1, tm_a)                     # >= T+1 so row T is all-zero
    x = jnp.pad(inp, ((0, T_pad_a - T), (0, 0))).astype(compute_dtype)
    q_s, k_s, v_s = qkv_project(
        x,
        params["w_qs"].astype(compute_dtype),
        params["w_ks"].astype(compute_dtype),
        params["w_vs"].astype(compute_dtype),
        tm=tm_a,
    )

    # pad_and_rearrange index maps + key bias (static host values).
    starts = np.concatenate([[0], np.cumsum(lengths)]).astype(np.int64)
    tok_idx = np.full((mb_pad, Lp), T, dtype=np.int32)   # row T of q_s/k_s/v_s is zero
    flat_idx = np.empty((T,), dtype=np.int32)
    bias_np = np.full((mb_pad, 1, Lp), -1e30, dtype=np.float32)
    for j, l in enumerate(lengths):
        l = int(l)
        tok_idx[j, :l] = np.arange(starts[j], starts[j] + l, dtype=np.int32)
        flat_idx[starts[j]:starts[j] + l] = j * Lp + np.arange(l, dtype=np.int32)
        bias_np[j, 0, :l] = 0.0
    tok_flat = jnp.asarray(tok_idx.reshape(-1))
    flat_idx_j = jnp.asarray(flat_idx)
    bias = jnp.asarray(bias_np)

    # Single gather per tensor: packed (head-leading) -> padded, no transposes.
    q_pad = jnp.take(q_s, tok_flat, axis=1).reshape(n_head, mb_pad, Lp, d_k)
    k_pad = jnp.take(k_s, tok_flat, axis=1).reshape(n_head, mb_pad, Lp, d_k)
    v_pad = jnp.take(v_s, tok_flat, axis=1).reshape(n_head, mb_pad, Lp, d_v)

    # ---- Kernel B: attention (SB sentences x all heads per grid step) ----
    out_pad, attn_pad = scaled_dot_attention(
        q_pad, k_pad, v_pad, bias, temper,
        sb=sb, with_attn=return_attn, attn_dtype=attn_dtype, exp_dtype=compute_dtype,
    )

    # unpad (single gather, stays head-leading); combine_v happens inside Kernel C.
    out_flat = out_pad.reshape(n_head, mb_pad * Lp, d_v)
    outputs_h = jnp.take(out_flat, flat_idx_j, axis=1)   # (n_head, T, d_v)

    # ---- Kernel C: proj + residual dropout (identity, eval) + LayerNormalization ----
    tm_c = min(tm_tokens, _round_up(T, 8))
    T_pad_c = _round_up(T, tm_c)
    outputs_h = jnp.pad(outputs_h, ((0, 0), (0, T_pad_c - T), (0, 0)))
    residual = jnp.pad(inp, ((0, T_pad_c - T), (0, 0))).astype(jnp.float32)
    w_proj_h = params["w_proj"].reshape(n_head, d_v, d_model).astype(compute_dtype)
    out = proj_residual_layernorm(
        outputs_h, w_proj_h, residual,
        params["gamma"].reshape(1, -1).astype(jnp.float32),
        params["beta"].reshape(1, -1).astype(jnp.float32),
        eps=1e-3, tm=tm_c,
    )[:T]

    if return_attn:
        attns = attn_pad[:, :mb, :L, :L].astype(jnp.float32).reshape(n_head * mb, L, L)
    else:
        attns = None
    return out, attns


# ----------------------------------------------------------------------------------
# Pure-JAX reference (for correctness check; mirrors the torch module semantics).
# ----------------------------------------------------------------------------------
def reference(inp, lengths, params, *, n_head, d_k, d_v):
    T, d_model = inp.shape
    mb = len(lengths)
    L = int(max(lengths))
    temper = float(d_model) ** 0.5

    q_s = jnp.einsum("td,hdk->htk", inp, params["w_qs"])
    k_s = jnp.einsum("td,hdk->htk", inp, params["w_ks"])
    v_s = jnp.einsum("td,hdk->htk", inp, params["w_vs"])

    starts = np.concatenate([[0], np.cumsum(lengths)]).astype(int)
    q_pad = jnp.zeros((n_head, mb, L, d_k), jnp.float32)
    k_pad = jnp.zeros((n_head, mb, L, d_k), jnp.float32)
    v_pad = jnp.zeros((n_head, mb, L, d_v), jnp.float32)
    invalid = np.ones((mb, L), np.float32)
    for i, (s, e) in enumerate(zip(starts[:-1], starts[1:])):
        q_pad = q_pad.at[:, i, : e - s, :].set(q_s[:, s:e, :])
        k_pad = k_pad.at[:, i, : e - s, :].set(k_s[:, s:e, :])
        v_pad = v_pad.at[:, i, : e - s, :].set(v_s[:, s:e, :])
        invalid[i, : e - s] = 0.0
    mask = jnp.asarray(
        np.tile(np.broadcast_to(invalid[:, None, :], (mb, L, L)), (n_head, 1, 1)) > 0.5
    )
    q_pad = q_pad.reshape(n_head * mb, L, d_k)
    k_pad = k_pad.reshape(n_head * mb, L, d_k)
    v_pad = v_pad.reshape(n_head * mb, L, d_v)

    s = jnp.einsum("bqd,bkd->bqk", q_pad, k_pad) / temper
    s = jnp.where(mask, -jnp.inf, s)
    smax = jnp.max(s, axis=-1, keepdims=True)
    e = jnp.exp(s - smax)
    p = e / jnp.sum(e, axis=-1, keepdims=True)
    out_pad = jnp.einsum("bqk,bkd->bqd", p, v_pad)

    out4 = out_pad.reshape(n_head, mb, L, d_v)
    pieces = [out4[:, i, : int(l), :] for i, l in enumerate(lengths)]
    outputs = jnp.concatenate(pieces, axis=1)
    outputs = jnp.transpose(outputs, (1, 0, 2)).reshape(T, n_head * d_v)

    y = outputs @ params["w_proj"] + inp
    mu = jnp.mean(y, axis=-1, keepdims=True)
    var = jnp.sum((y - mu) ** 2, axis=-1, keepdims=True) / (d_model - 1)
    ln = (y - mu) / (jnp.sqrt(var) + 1e-3) * params["gamma"] + params["beta"]
    return ln, p


if __name__ == "__main__":
    n_head, d_model, d_k, d_v = 2, 32, 16, 16
    lengths = [6, 8]                         # two sentences, packed
    T = sum(lengths)

    key = jax.random.PRNGKey(0)
    kx, kq, kk, kv, kp = jax.random.split(key, 5)

    inp = jax.random.normal(kx, (T, d_model), jnp.float32)

    std_qk = (2.0 / (d_model + d_k)) ** 0.5          # xavier_normal
    std_v = (2.0 / (d_model + d_v)) ** 0.5
    params = {
        "w_qs": jax.random.normal(kq, (n_head, d_model, d_k), jnp.float32) * std_qk,
        "w_ks": jax.random.normal(kk, (n_head, d_model, d_k), jnp.float32) * std_qk,
        "w_vs": jax.random.normal(kv, (n_head, d_model, d_v), jnp.float32) * std_v,
        # nn.Linear(n_head*d_v, d_model, bias=False): y = x @ W^T; stored as [n_head*d_v, d_model]
        "w_proj": jax.random.normal(kp, (n_head * d_v, d_model), jnp.float32)
        * (1.0 / (n_head * d_v)) ** 0.5,
        "gamma": jnp.ones((d_model,), jnp.float32),
        "beta": jnp.zeros((d_model,), jnp.float32),
    }

    ref_out, ref_attns = reference(inp, lengths, params, n_head=n_head, d_k=d_k, d_v=d_v)

    # fp32 path: tight numerical check of kernel structure.
    out32, attns32 = multi_head_attention(
        inp, lengths, params, n_head=n_head, d_k=d_k, d_v=d_v, use_bf16=False
    )
    out32 = jax.block_until_ready(out32)
    attns32 = jax.block_until_ready(attns32)
    np.testing.assert_allclose(np.asarray(out32), np.asarray(ref_out), rtol=1e-2, atol=1e-2)
    np.testing.assert_allclose(np.asarray(attns32), np.asarray(ref_attns), rtol=1e-2, atol=1e-2)

    # default bf16-MXU path (f32 accumulation, bf16 exp / bf16 writebacks): looser tolerance.
    out16, attns16 = multi_head_attention(
        inp, lengths, params, n_head=n_head, d_k=d_k, d_v=d_v, use_bf16=True
    )
    out16 = jax.block_until_ready(out16)
    attns16 = jax.block_until_ready(attns16)
    np.testing.assert_allclose(np.asarray(out16), np.asarray(ref_out), rtol=4e-2, atol=4e-2)
    np.testing.assert_allclose(np.asarray(attns16), np.asarray(ref_attns), rtol=4e-2, atol=4e-2)

    # fast path: no attention-prob writeback at all.
    out_fast, attns_none = multi_head_attention(
        inp, lengths, params, n_head=n_head, d_k=d_k, d_v=d_v,
        use_bf16=True, return_attn=False
    )
    out_fast = jax.block_until_ready(out_fast)
    assert attns_none is None
    np.testing.assert_allclose(np.asarray(out_fast), np.asarray(ref_out), rtol=4e-2, atol=4e-2)

    assert out16.shape == (T, d_model)
    assert attns16.shape == (n_head * len(lengths), max(lengths), max(lengths))
    print("KERNEL_OK")
</pallas_src>

<mosaic_0001>
module attributes {stable_mosaic.version = 11 : i64} {
  func.func @_qkv_kernel(%arg0: i32, %arg1: memref<16x32xf32, #tpu.memory_space<vmem>>, %arg2: memref<2x32x16xf32, #tpu.memory_space<vmem>>, %arg3: memref<2x32x16xf32, #tpu.memory_space<vmem>>, %arg4: memref<2x32x16xf32, #tpu.memory_space<vmem>>, %arg5: memref<2x16x16xf32, #tpu.memory_space<vmem>>, %arg6: memref<2x16x16xf32, #tpu.memory_space<vmem>>, %arg7: memref<2x16x16xf32, #tpu.memory_space<vmem>>) attributes {dimension_semantics = [#tpu.dimension_semantics<parallel>], iteration_bounds = array<i64: 1>, scalar_prefetch = 0 : i64, scratch_operands = 0 : i64, tpu.core_type = #tpu.core_type<tc>, window_params = [{transform_indices = @transform_0, window_bounds = array<i64: 16, 32>}, {pipeline_mode = #tpu.pipeline_mode<synchronous>, transform_indices = @transform_1, window_bounds = array<i64: 2, 32, 16>}, {pipeline_mode = #tpu.pipeline_mode<synchronous>, transform_indices = @transform_2, window_bounds = array<i64: 2, 32, 16>}, {pipeline_mode = #tpu.pipeline_mode<synchronous>, transform_indices = @transform_3, window_bounds = array<i64: 2, 32, 16>}, {transform_indices = @transform_4, window_bounds = array<i64: 2, 16, 16>}, {transform_indices = @transform_5, window_bounds = array<i64: 2, 16, 16>}, {transform_indices = @transform_6, window_bounds = array<i64: 2, 16, 16>}]} {
    %c0 = arith.constant 0 : index
    %c0_0 = arith.constant 0 : index
    %0 = vector.load %arg1[%c0, %c0_0] : memref<16x32xf32, #tpu.memory_space<vmem>>, vector<16x32xf32>
    %c0_1 = arith.constant 0 : index
    %c0_2 = arith.constant 0 : index
    %c0_3 = arith.constant 0 : index
    %1 = vector.load %arg2[%c0_1, %c0_2, %c0_3] : memref<2x32x16xf32, #tpu.memory_space<vmem>>, vector<1x32x16xf32>
    %2 = vector.shape_cast %1 : vector<1x32x16xf32> to vector<32x16xf32>
    %cst = arith.constant dense<0.000000e+00> : vector<16x16xf32>
    %3 = tpu.matmul %0, %2, %cst {dimension_numbers = #tpu.dot_dimension_numbers<[1], [0], [0], [1], [0, 0, 1, 1], [], []>} : vector<16x32xf32>, vector<32x16xf32>, vector<16x16xf32> -> vector<16x16xf32>
    %c0_4 = arith.constant 0 : index
    %c0_5 = arith.constant 0 : index
    %c0_6 = arith.constant 0 : index
    %4 = vector.load %arg5[%c0_4, %c0_5, %c0_6] : memref<2x16x16xf32, #tpu.memory_space<vmem>>, vector<1x16x16xf32>
    %5 = vector.shape_cast %4 : vector<1x16x16xf32> to vector<16x16xf32>
    %6 = vector.shape_cast %3 : vector<16x16xf32> to vector<1x16x16xf32>
    tpu.vector_store %arg5[%c0_4, %c0_5, %c0_6], %6 {strides = array<i32>} : memref<2x16x16xf32, #tpu.memory_space<vmem>>, vector<1x16x16xf32>,
    %c0_7 = arith.constant 0 : index
    %c0_8 = arith.constant 0 : index
    %c0_9 = arith.constant 0 : index
    %7 = vector.load %arg3[%c0_7, %c0_8, %c0_9] : memref<2x32x16xf32, #tpu.memory_space<vmem>>, vector<1x32x16xf32>
    %8 = vector.shape_cast %7 : vector<1x32x16xf32> to vector<32x16xf32>
    %cst_10 = arith.constant dense<0.000000e+00> : vector<16x16xf32>
    %9 = tpu.matmul %0, %8, %cst_10 {dimension_numbers = #tpu.dot_dimension_numbers<[1], [0], [0], [1], [0, 0, 1, 1], [], []>} : vector<16x32xf32>, vector<32x16xf32>, vector<16x16xf32> -> vector<16x16xf32>
    %c0_11 = arith.constant 0 : index
    %c0_12 = arith.constant 0 : index
    %c0_13 = arith.constant 0 : index
    %10 = vector.load %arg6[%c0_11, %c0_12, %c0_13] : memref<2x16x16xf32, #tpu.memory_space<vmem>>, vector<1x16x16xf32>
    %11 = vector.shape_cast %10 : vector<1x16x16xf32> to vector<16x16xf32>
    %12 = vector.shape_cast %9 : vector<16x16xf32> to vector<1x16x16xf32>
    tpu.vector_store %arg6[%c0_11, %c0_12, %c0_13], %12 {strides = array<i32>} : memref<2x16x16xf32, #tpu.memory_space<vmem>>, vector<1x16x16xf32>,
    %c0_14 = arith.constant 0 : index
    %c0_15 = arith.constant 0 : index
    %c0_16 = arith.constant 0 : index
    %13 = vector.load %arg4[%c0_14, %c0_15, %c0_16] : memref<2x32x16xf32, #tpu.memory_space<vmem>>, vector<1x32x16xf32>
    %14 = vector.shape_cast %13 : vector<1x32x16xf32> to vector<32x16xf32>
    %cst_17 = arith.constant dense<0.000000e+00> : vector<16x16xf32>
    %15 = tpu.matmul %0, %14, %cst_17 {dimension_numbers = #tpu.dot_dimension_numbers<[1], [0], [0], [1], [0, 0, 1, 1], [], []>} : vector<16x32xf32>, vector<32x16xf32>, vector<16x16xf32> -> vector<16x16xf32>
    %c0_18 = arith.constant 0 : index
    %c0_19 = arith.constant 0 : index
    %c0_20 = arith.constant 0 : index
    %16 = vector.load %arg7[%c0_18, %c0_19, %c0_20] : memref<2x16x16xf32, #tpu.memory_space<vmem>>, vector<1x16x16xf32>
    %17 = vector.shape_cast %16 : vector<1x16x16xf32> to vector<16x16xf32>
    %18 = vector.shape_cast %15 : vector<16x16xf32> to vector<1x16x16xf32>
    tpu.vector_store %arg7[%c0_18, %c0_19, %c0_20], %18 {strides = array<i32>} : memref<2x16x16xf32, #tpu.memory_space<vmem>>, vector<1x16x16xf32>,
    %c1 = arith.constant 1 : index
    %c0_21 = arith.constant 0 : index
    %c0_22 = arith.constant 0 : index
    %19 = vector.load %arg2[%c1, %c0_21, %c0_22] : memref<2x32x16xf32, #tpu.memory_space<vmem>>, vector<1x32x16xf32>
    %20 = vector.shape_cast %19 : vector<1x32x16xf32> to vector<32x16xf32>
    %cst_23 = arith.constant dense<0.000000e+00> : vector<16x16xf32>
    %21 = tpu.matmul %0, %20, %cst_23 {dimension_numbers = #tpu.dot_dimension_numbers<[1], [0], [0], [1], [0, 0, 1, 1], [], []>} : vector<16x32xf32>, vector<32x16xf32>, vector<16x16xf32> -> vector<16x16xf32>
    %c1_24 = arith.constant 1 : index
    %c0_25 = arith.constant 0 : index
    %c0_26 = arith.constant 0 : index
    %22 = vector.load %arg5[%c1_24, %c0_25, %c0_26] : memref<2x16x16xf32, #tpu.memory_space<vmem>>, vector<1x16x16xf32>
    %23 = vector.shape_cast %22 : vector<1x16x16xf32> to vector<16x16xf32>
    %24 = vector.shape_cast %21 : vector<16x16xf32> to vector<1x16x16xf32>
    tpu.vector_store %arg5[%c1_24, %c0_25, %c0_26], %24 {strides = array<i32>} : memref<2x16x16xf32, #tpu.memory_space<vmem>>, vector<1x16x16xf32>,
    %c1_27 = arith.constant 1 : index
    %c0_28 = arith.constant 0 : index
    %c0_29 = arith.constant 0 : index
    %25 = vector.load %arg3[%c1_27, %c0_28, %c0_29] : memref<2x32x16xf32, #tpu.memory_space<vmem>>, vector<1x32x16xf32>
    %26 = vector.shape_cast %25 : vector<1x32x16xf32> to vector<32x16xf32>
    %cst_30 = arith.constant dense<0.000000e+00> : vector<16x16xf32>
    %27 = tpu.matmul %0, %26, %cst_30 {dimension_numbers = #tpu.dot_dimension_numbers<[1], [0], [0], [1], [0, 0, 1, 1], [], []>} : vector<16x32xf32>, vector<32x16xf32>, vector<16x16xf32> -> vector<16x16xf32>
    %c1_31 = arith.constant 1 : index
    %c0_32 = arith.constant 0 : index
    %c0_33 = arith.constant 0 : index
    %28 = vector.load %arg6[%c1_31, %c0_32, %c0_33] : memref<2x16x16xf32, #tpu.memory_space<vmem>>, vector<1x16x16xf32>
    %29 = vector.shape_cast %28 : vector<1x16x16xf32> to vector<16x16xf32>
    %30 = vector.shape_cast %27 : vector<16x16xf32> to vector<1x16x16xf32>
    tpu.vector_store %arg6[%c1_31, %c0_32, %c0_33], %30 {strides = array<i32>} : memref<2x16x16xf32, #tpu.memory_space<vmem>>, vector<1x16x16xf32>,
    %c1_34 = arith.constant 1 : index
    %c0_35 = arith.constant 0 : index
    %c0_36 = arith.constant 0 : index
    %31 = vector.load %arg4[%c1_34, %c0_35, %c0_36] : memref<2x32x16xf32, #tpu.memory_space<vmem>>, vector<1x32x16xf32>
    %32 = vector.shape_cast %31 : vector<1x32x16xf32> to vector<32x16xf32>
    %cst_37 = arith.constant dense<0.000000e+00> : vector<16x16xf32>
    %33 = tpu.matmul %0, %32, %cst_37 {dimension_numbers = #tpu.dot_dimension_numbers<[1], [0], [0], [1], [0, 0, 1, 1], [], []>} : vector<16x32xf32>, vector<32x16xf32>, vector<16x16xf32> -> vector<16x16xf32>
    %c1_38 = arith.constant 1 : index
    %c0_39 = arith.constant 0 : index
    %c0_40 = arith.constant 0 : index
    %34 = vector.load %arg7[%c1_38, %c0_39, %c0_40] : memref<2x16x16xf32, #tpu.memory_space<vmem>>, vector<1x16x16xf32>
    %35 = vector.shape_cast %34 : vector<1x16x16xf32> to vector<16x16xf32>
    %36 = vector.shape_cast %33 : vector<16x16xf32> to vector<1x16x16xf32>
    tpu.vector_store %arg7[%c1_38, %c0_39, %c0_40], %36 {strides = array<i32>} : memref<2x16x16xf32, #tpu.memory_space<vmem>>, vector<1x16x16xf32>,
    return
  }
  func.func @transform_0(%arg0: i32) -> (i32, i32) {
    %c0_i32 = arith.constant 0 : i32
    %c0_i32_0 = arith.constant 0 : i32
    return %arg0, %c0_i32 : i32, i32
  }
  func.func @transform_1(%arg0: i32) -> (i32, i32, i32) {
    %c0_i32 = arith.constant 0 : i32
    %c0_i32_0 = arith.constant 0 : i32
    %c0_i32_1 = arith.constant 0 : i32
    %c0_i32_2 = arith.constant 0 : i32
    return %c0_i32, %c0_i32_0, %c0_i32_1 : i32, i32, i32
  }
  func.func @transform_2(%arg0: i32) -> (i32, i32, i32) {
    %c0_i32 = arith.constant 0 : i32
    %c0_i32_0 = arith.constant 0 : i32
    %c0_i32_1 = arith.constant 0 : i32
    %c0_i32_2 = arith.constant 0 : i32
    return %c0_i32, %c0_i32_0, %c0_i32_1 : i32, i32, i32
  }
  func.func @transform_3(%arg0: i32) -> (i32, i32, i32) {
    %c0_i32 = arith.constant 0 : i32
    %c0_i32_0 = arith.constant 0 : i32
    %c0_i32_1 = arith.constant 0 : i32
    %c0_i32_2 = arith.constant 0 : i32
    return %c0_i32, %c0_i32_0, %c0_i32_1 : i32, i32, i32
  }
  func.func @transform_4(%arg0: i32) -> (i32, i32, i32) {
    %c0_i32 = arith.constant 0 : i32
    %c0_i32_0 = arith.constant 0 : i32
    %c0_i32_1 = arith.constant 0 : i32
    return %c0_i32, %arg0, %c0_i32_0 : i32, i32, i32
  }
  func.func @transform_5(%arg0: i32) -> (i32, i32, i32) {
    %c0_i32 = arith.constant 0 : i32
    %c0_i32_0 = arith.constant 0 : i32
    %c0_i32_1 = arith.constant 0 : i32
    return %c0_i32, %arg0, %c0_i32_0 : i32, i32, i32
  }
  func.func @transform_6(%arg0: i32) -> (i32, i32, i32) {
    %c0_i32 = arith.constant 0 : i32
    %c0_i32_0 = arith.constant 0 : i32
    %c0_i32_1 = arith.constant 0 : i32
    return %c0_i32, %arg0, %c0_i32_0 : i32, i32, i32
  }
}

</mosaic_0001>

<llo_original>
// kernel: tpu_custom_call.1
$region0: #{tpu_custom_call.1}
  #allocation0 [shape = 'u32[]', space=smem, size = 0x4, offset = 0x4, fixed_abs, tag = 'smem constant byte address 0x4 - core index']
  #allocation1 [shape = 'u32[144,128]{1,0:T(1,128)}', space=vmem, size = 0x12000, scoped, tag = 'internal scratch']
  %s0 = inlined_call_operand.vmem [shape: f32[16,32], index: 0, kind: input, shape index: {}]
  %s1 = inlined_call_operand.vmem [shape: f32[2,32,16], index: 1, kind: input, shape index: {}]
  %s2 = inlined_call_operand.vmem [shape: f32[2,32,16], index: 2, kind: input, shape index: {}]
  %s3 = inlined_call_operand.vmem [shape: f32[2,32,16], index: 3, kind: input, shape index: {}]
  %s4 = inlined_call_operand.hbm [shape: f32[2,16,16], index: 4, kind: output, shape index: {0}]
  %s5 = inlined_call_operand.hbm [shape: f32[2,16,16], index: 5, kind: output, shape index: {1}]
  %s6 = inlined_call_operand.hbm [shape: f32[2,16,16], index: 6, kind: output, shape index: {2}]
  %7 = xla_tuple %s4, %s5, %s6
  %s8 = sld [smem:[#allocation0]]
  $region42: #{tpu_custom_call.1} parent=0
    _
  %s10 = ssub.s32 1, %s8
  %s11 = scalar_select 0, %s10, %s8
  $region1: #{tpu_custom_call.1} parent=0
    #allocation2 [shape = 'u8[16384]{0}', space=vmem, size = 0x4000, scoped, tag = 'output window, operand 0, single buffered']
    #allocation3 [shape = 's32[1]{0}', space=sflag, size = 0x4, scoped, tag = 'scoped memory for tpu_custom_call.1']
    #allocation4 [shape = 'u8[16384]{0}', space=vmem, size = 0x4000, scoped, tag = 'output window, operand 1, single buffered']
    #allocation5 [shape = 's32[1]{0}', space=sflag, size = 0x4, scoped, tag = 'scoped memory for tpu_custom_call.1']
    #allocation6 [shape = 'u8[16384]{0}', space=vmem, size = 0x4000, scoped, tag = 'output window, operand 2, single buffered']
    %12 = vsyncpa [#allocation3], 0
    %13 = vsyncpa [#allocation5], 0
    // Predicated region
    $region2: #{tpu_custom_call.1} parent=1 // pred_check
      _
    $region3: #{tpu_custom_call.1} parent=1 // pred_check_branch
      %15 = sbr.rel (0) target = $region5
    $region4: #{tpu_custom_call.1} parent=1 // pred_region
      _
    $region5: #{tpu_custom_call.1} parent=1 // pred_fallthru
      _
    // Predicated region
    $region6: #{tpu_custom_call.1} parent=1 // pred_check
      _
    $region7: #{tpu_custom_call.1} parent=1 // pred_check_branch
      %17 = sbr.rel (0) target = $region9
    $region8: #{tpu_custom_call.1} parent=1 // pred_region
      _
    $region9: #{tpu_custom_call.1} parent=1 // pred_fallthru
      _
    // Predicated region
    $region10: #{tpu_custom_call.1} parent=1 // pred_check
      _
    $region11: #{tpu_custom_call.1} parent=1 // pred_check_branch
      %19 = sbr.rel (0) target = $region13
    $region12: #{tpu_custom_call.1} parent=1 // pred_region
      _
    $region13: #{tpu_custom_call.1} parent=1 // pred_fallthru
      _
    // Predicated region
    $region14: #{tpu_custom_call.1} parent=1 // pred_check
      _
    $region15: #{tpu_custom_call.1} parent=1 // pred_check_branch
      %21 = sbr.rel (0) target = $region17
    $region16: #{tpu_custom_call.1} parent=1 // pred_region
      _
    $region17: #{tpu_custom_call.1} parent=1 // pred_fallthru
      _
    %v22 = vld [vmem:[%s0] sm:$0xff]
    %v23 = vld [vmem:[%s0 + $0x8] sm:$0xff]
    %v24 = vld [vmem:[%s1] sm:$0xff]
    %v25 = vld [vmem:[%s1 + $0x8] sm:$0xff]
    %v26 = vld [vmem:[%s1 + $0x10] sm:$0xff]
    %v27 = vld [vmem:[%s1 + $0x18] sm:$0xff]
    %vm28 = vcmask 261120
    %v30 = vsel %vm28, %v22, 0
    %v33 = vsel %vm28, %v23, 0
    %35 = vmatprep.subr.mxu0 0.0
    %36 = vmatpush1.msra.mxu0 0.0
    %37 = vmatprep.subr.mxu0 0.0
    %38 = vmatpush1.msra.mxu0 0.0
    %39 = vmatprep.subr.mxu0 0.0
    %40 = vmatpush1.msra.mxu0 0.0
    %41 = vmatprep.subr.mxu0 0.0
    %42 = vmatpush1.msra.mxu0 0.0
    %43 = vmatprep.subr.mxu0 0.0
    %44 = vmatpush1.msra.mxu0 0.0
    %45 = vmatprep.subr.mxu0 0.0
    %46 = vmatpush1.msra.mxu0 0.0
    %47 = vmatprep.subr.mxu0 0.0
    %48 = vmatpush1.msra.mxu0 0.0
    %49 = vmatprep.subr.mxu0 0.0
    %50 = vmatpush1.msra.mxu0 0.0
    %51 = vmatprep.subr.mxu0 0.0
    %52 = vmatpush1.msra.mxu0 0.0
    %53 = vmatprep.subr.mxu0 0.0
    %54 = vmatpush1.msra.mxu0 0.0
    %55 = vmatprep.subr.mxu0 0.0
    %56 = vmatpush1.msra.mxu0 0.0
    %57 = vmatprep.subr.mxu0 0.0
    %58 = vmatpush1.msra.mxu0 0.0
    %59 = vmatprep.subr.mxu0 0.0
    %60 = vmatpush1.msra.mxu0 %v27
    %61 = vmatprep.subr.mxu0 0.0
    %62 = vmatpush1.msra.mxu0 %v26
    %63 = vmatprep.subr.mxu0 0.0
    %64 = vmatpush1.msra.mxu0 %v25
    %65 = vmatprep.subr.mxu0 0.0
    %66 = vmatpush1.msra.mxu0 %v24
    %67 = vmatprep.subr.mxu0 0.0
    %68 = vmatpush2.msra.mxu0 0.0
    %69 = vmatprep.subr.mxu0 0.0
    %70 = vmatpush2.msra.mxu0 0.0
    %71 = vmatprep.subr.mxu0 0.0
    %72 = vmatpush2.msra.mxu0 0.0
    %73 = vmatprep.subr.mxu0 0.0
    %74 = vmatpush2.msra.mxu0 0.0
    %75 = vmatprep.subr.mxu0 0.0
    %76 = vmatpush2.msra.mxu0 0.0
    %77 = vmatprep.subr.mxu0 0.0
    %78 = vmatpush2.msra.mxu0 0.0
    %79 = vmatprep.subr.mxu0 0.0
    %80 = vmatpush2.msra.mxu0 0.0
    %81 = vmatprep.subr.mxu0 0.0
    %82 = vmatpush2.msra.mxu0 0.0
    %83 = vmatprep.subr.mxu0 0.0
    %84 = vmatpush2.msra.mxu0 0.0
    %85 = vmatprep.subr.mxu0 0.0
    %86 = vmatpush2.msra.mxu0 0.0
    %87 = vmatprep.subr.mxu0 0.0
    %88 = vmatpush2.msra.mxu0 0.0
    %89 = vmatprep.subr.mxu0 0.0
    %90 = vmatpush2.msra.mxu0 0.0
    %91 = vmatprep.subr.mxu0 0.0
    %92 = vmatpush2.msra.mxu0 0.0
    %93 = vmatprep.subr.mxu0 0.0
    %94 = vmatpush2.msra.mxu0 0.0
    %95 = vmatprep.subr.mxu0 0.0
    %96 = vmatpush2.msra.mxu0 0.0
    %97 = vmatprep.subr.mxu0 0.0
    %98 = vmatpush2.msra.mxu0 0.0
    %99 = vmatprep.mubr.f32.mxu0 0.0
    %100 = vmatmul.mubr.f32.gmra.mxu0 %v30
    %v101 = vpop.f32.mrf.mxu0
    %v102 = vadd.f32 0.0, %v101
    %v103 = vpop.f32.mrf.mxu0
    %104 = vmatprep.mubr.f32.mxu0 0.0
    %105 = vmatmul.mubr.f32.gmra.mxu0 %v33
    %v106 = vpop.f32.mrf.mxu0
    %v107 = vadd.f32 0.0, %v106
    %v108 = vpop.f32.mrf.mxu0
    %109 = vdwg.mxu0
    %vm110 = vcmask 130048
    %111 = vst.msk [vmem:[#allocation2] sm:$0xff] %vm110, %v102
    %112 = vst.msk [vmem:[#allocation2 + $0x8] sm:$0xff] %vm110, %v107
    %v113 = vld [vmem:[%s2] sm:$0xff]
    %v114 = vld [vmem:[%s2 + $0x8] sm:$0xff]
    %v115 = vld [vmem:[%s2 + $0x10] sm:$0xff]
    %v116 = vld [vmem:[%s2 + $0x18] sm:$0xff]
    %117 = vmatprep.subr.mxu0 0.0
    %118 = vmatpush1.msra.mxu0 0.0
    %119 = vmatprep.subr.mxu0 0.0
    %120 = vmatpush1.msra.mxu0 0.0
    %121 = vmatprep.subr.mxu0 0.0
    %122 = vmatpush1.msra.mxu0 0.0
    %123 = vmatprep.subr.mxu0 0.0
    %124 = vmatpush1.msra.mxu0 0.0
    %125 = vmatprep.subr.mxu0 0.0
    %126 = vmatpush1.msra.mxu0 0.0
    %127 = vmatprep.subr.mxu0 0.0
    %128 = vmatpush1.msra.mxu0 0.0
    %129 = vmatprep.subr.mxu0 0.0
    %130 = vmatpush1.msra.mxu0 0.0
    %131 = vmatprep.subr.mxu0 0.0
    %132 = vmatpush1.msra.mxu0 0.0
    %133 = vmatprep.subr.mxu0 0.0
    %134 = vmatpush1.msra.mxu0 0.0
    %135 = vmatprep.subr.mxu0 0.0
    %136 = vmatpush1.msra.mxu0 0.0
    %137 = vmatprep.subr.mxu0 0.0
    %138 = vmatpush1.msra.mxu0 0.0
    %139 = vmatprep.subr.mxu0 0.0
    %140 = vmatpush1.msra.mxu0 0.0
    %141 = vmatprep.subr.mxu0 0.0
    %142 = vmatpush1.msra.mxu0 %v116
    %143 = vmatprep.subr.mxu0 0.0
    %144 = vmatpush1.msra.mxu0 %v115
    %145 = vmatprep.subr.mxu0 0.0
    %146 = vmatpush1.msra.mxu0 %v114
    %147 = vmatprep.subr.mxu0 0.0
    %148 = vmatpush1.msra.mxu0 %v113
    %149 = vmatprep.subr.mxu0 0.0
    %150 = vmatpush2.msra.mxu0 0.0
    %151 = vmatprep.subr.mxu0 0.0
    %152 = vmatpush2.msra.mxu0 0.0
    %153 = vmatprep.subr.mxu0 0.0
    %154 = vmatpush2.msra.mxu0 0.0
    %155 = vmatprep.subr.mxu0 0.0
    %156 = vmatpush2.msra.mxu0 0.0
    %157 = vmatprep.subr.mxu0 0.0
    %158 = vmatpush2.msra.mxu0 0.0
    %159 = vmatprep.subr.mxu0 0.0
    %160 = vmatpush2.msra.mxu0 0.0
    %161 = vmatprep.subr.mxu0 0.0
    %162 = vmatpush2.msra.mxu0 0.0
    %163 = vmatprep.subr.mxu0 0.0
    %164 = vmatpush2.msra.mxu0 0.0
    %165 = vmatprep.subr.mxu0 0.0
    %166 = vmatpush2.msra.mxu0 0.0
    %167 = vmatprep.subr.mxu0 0.0
    %168 = vmatpush2.msra.mxu0 0.0
    %169 = vmatprep.subr.mxu0 0.0
    %170 = vmatpush2.msra.mxu0 0.0
    %171 = vmatprep.subr.mxu0 0.0
    %172 = vmatpush2.msra.mxu0 0.0
    %173 = vmatprep.subr.mxu0 0.0
    %174 = vmatpush2.msra.mxu0 0.0
    %175 = vmatprep.subr.mxu0 0.0
    %176 = vmatpush2.msra.mxu0 0.0
    %177 = vmatprep.subr.mxu0 0.0
    %178 = vmatpush2.msra.mxu0 0.0
    %179 = vmatprep.subr.mxu0 0.0
    %180 = vmatpush2.msra.mxu0 0.0
    %181 = vmatprep.mubr.f32.mxu0 0.0
    %182 = vmatmul.mubr.f32.gmra.mxu0 %v30
    %v183 = vpop.f32.mrf.mxu0
    %v184 = vadd.f32 0.0, %v183
    %v185 = vpop.f32.mrf.mxu0
    %186 = vmatprep.mubr.f32.mxu0 0.0
    %187 = vmatmul.mubr.f32.gmra.mxu0 %v33
    %v188 = vpop.f32.mrf.mxu0
    %v189 = vadd.f32 0.0, %v188
    %v190 = vpop.f32.mrf.mxu0
    %191 = vdwg.mxu0
    %192 = vst.msk [vmem:[#allocation4] sm:$0xff] %vm110, %v184
    %193 = vst.msk [vmem:[#allocation4 + $0x8] sm:$0xff] %vm110, %v189
    %v194 = vld [vmem:[%s3] sm:$0xff]
    %v195 = vld [vmem:[%s3 + $0x8] sm:$0xff]
    %v196 = vld [vmem:[%s3 + $0x10] sm:$0xff]
    %v197 = vld [vmem:[%s3 + $0x18] sm:$0xff]
    %198 = vmatprep.subr.mxu0 0.0
    %199 = vmatpush1.msra.mxu0 0.0
    %200 = vmatprep.subr.mxu0 0.0
    %201 = vmatpush1.msra.mxu0 0.0
    %202 = vmatprep.subr.mxu0 0.0
    %203 = vmatpush1.msra.mxu0 0.0
    %204 = vmatprep.subr.mxu0 0.0
    %205 = vmatpush1.msra.mxu0 0.0
    %206 = vmatprep.subr.mxu0 0.0
    %207 = vmatpush1.msra.mxu0 0.0
    %208 = vmatprep.subr.mxu0 0.0
    %209 = vmatpush1.msra.mxu0 0.0
    %210 = vmatprep.subr.mxu0 0.0
    %211 = vmatpush1.msra.mxu0 0.0
    %212 = vmatprep.subr.mxu0 0.0
    %213 = vmatpush1.msra.mxu0 0.0
    %214 = vmatprep.subr.mxu0 0.0
    %215 = vmatpush1.msra.mxu0 0.0
    %216 = vmatprep.subr.mxu0 0.0
    %217 = vmatpush1.msra.mxu0 0.0
    %218 = vmatprep.subr.mxu0 0.0
    %219 = vmatpush1.msra.mxu0 0.0
    %220 = vmatprep.subr.mxu0 0.0
    %221 = vmatpush1.msra.mxu0 0.0
    %222 = vmatprep.subr.mxu0 0.0
    %223 = vmatpush1.msra.mxu0 %v197
    %224 = vmatprep.subr.mxu0 0.0
    %225 = vmatpush1.msra.mxu0 %v196
    %226 = vmatprep.subr.mxu0 0.0
    %227 = vmatpush1.msra.mxu0 %v195
    %228 = vmatprep.subr.mxu0 0.0
    %229 = vmatpush1.msra.mxu0 %v194
    %230 = vmatprep.subr.mxu0 0.0
    %231 = vmatpush2.msra.mxu0 0.0
    %232 = vmatprep.subr.mxu0 0.0
    %233 = vmatpush2.msra.mxu0 0.0
    %234 = vmatprep.subr.mxu0 0.0
    %235 = vmatpush2.msra.mxu0 0.0
    %236 = vmatprep.subr.mxu0 0.0
    %237 = vmatpush2.msra.mxu0 0.0
    %238 = vmatprep.subr.mxu0 0.0
    %239 = vmatpush2.msra.mxu0 0.0
    %240 = vmatprep.subr.mxu0 0.0
    %241 = vmatpush2.msra.mxu0 0.0
    %242 = vmatprep.subr.mxu0 0.0
    %243 = vmatpush2.msra.mxu0 0.0
    %244 = vmatprep.subr.mxu0 0.0
    %245 = vmatpush2.msra.mxu0 0.0
    %246 = vmatprep.subr.mxu0 0.0
    %247 = vmatpush2.msra.mxu0 0.0
    %248 = vmatprep.subr.mxu0 0.0
    %249 = vmatpush2.msra.mxu0 0.0
    %250 = vmatprep.subr.mxu0 0.0
    %251 = vmatpush2.msra.mxu0 0.0
    %252 = vmatprep.subr.mxu0 0.0
    %253 = vmatpush2.msra.mxu0 0.0
    %254 = vmatprep.subr.mxu0 0.0
    %255 = vmatpush2.msra.mxu0 0.0
    %256 = vmatprep.subr.mxu0 0.0
    %257 = vmatpush2.msra.mxu0 0.0
    %258 = vmatprep.subr.mxu0 0.0
    %259 = vmatpush2.msra.mxu0 0.0
    %260 = vmatprep.subr.mxu0 0.0
    %261 = vmatpush2.msra.mxu0 0.0
    %262 = vmatprep.mubr.f32.mxu0 0.0
    %263 = vmatmul.mubr.f32.gmra.mxu0 %v30
    %v264 = vpop.f32.mrf.mxu0
    %v265 = vadd.f32 0.0, %v264
    %v266 = vpop.f32.mrf.mxu0
    %267 = vmatprep.mubr.f32.mxu0 0.0
    %268 = vmatmul.mubr.f32.gmra.mxu0 %v33
    %v269 = vpop.f32.mrf.mxu0
    %v270 = vadd.f32 0.0, %v269
    %v271 = vpop.f32.mrf.mxu0
    %272 = vdwg.mxu0
    %273 = vst.msk [vmem:[#allocation6] sm:$0xff] %vm110, %v265
    %274 = vst.msk [vmem:[#allocation6 + $0x8] sm:$0xff] %vm110, %v270
    %s275 = scalar_lea.vmem %s1, 32
    %v276 = vld [vmem:[%s275] sm:$0xff]
    %v277 = vld [vmem:[%s275 + $0x8] sm:$0xff]
    %v278 = vld [vmem:[%s275 + $0x10] sm:$0xff]
    %v279 = vld [vmem:[%s275 + $0x18] sm:$0xff]
    %280 = vmatprep.subr.mxu0 0.0
    %281 = vmatpush1.msra.mxu0 0.0
    %282 = vmatprep.subr.mxu0 0.0
    %283 = vmatpush1.msra.mxu0 0.0
    %284 = vmatprep.subr.mxu0 0.0
    %285 = vmatpush1.msra.mxu0 0.0
    %286 = vmatprep.subr.mxu0 0.0
    %287 = vmatpush1.msra.mxu0 0.0
    %288 = vmatprep.subr.mxu0 0.0
    %289 = vmatpush1.msra.mxu0 0.0
    %290 = vmatprep.subr.mxu0 0.0
    %291 = vmatpush1.msra.mxu0 0.0
    %292 = vmatprep.subr.mxu0 0.0
    %293 = vmatpush1.msra.mxu0 0.0
    %294 = vmatprep.subr.mxu0 0.0
    %295 = vmatpush1.msra.mxu0 0.0
    %296 = vmatprep.subr.mxu0 0.0
    %297 = vmatpush1.msra.mxu0 0.0
    %298 = vmatprep.subr.mxu0 0.0
    %299 = vmatpush1.msra.mxu0 0.0
    %300 = vmatprep.subr.mxu0 0.0
    %301 = vmatpush1.msra.mxu0 0.0
    %302 = vmatprep.subr.mxu0 0.0
    %303 = vmatpush1.msra.mxu0 0.0
    %304 = vmatprep.subr.mxu0 0.0
    %305 = vmatpush1.msra.mxu0 %v279
    %306 = vmatprep.subr.mxu0 0.0
    %307 = vmatpush1.msra.mxu0 %v278
    %308 = vmatprep.subr.mxu0 0.0
    %309 = vmatpush1.msra.mxu0 %v277
    %310 = vmatprep.subr.mxu0 0.0
    %311 = vmatpush1.msra.mxu0 %v276
    %312 = vmatprep.subr.mxu0 0.0
    %313 = vmatpush2.msra.mxu0 0.0
    %314 = vmatprep.subr.mxu0 0.0
    %315 = vmatpush2.msra.mxu0 0.0
    %316 = vmatprep.subr.mxu0 0.0
    %317 = vmatpush2.msra.mxu0 0.0
    %318 = vmatprep.subr.mxu0 0.0
    %319 = vmatpush2.msra.mxu0 0.0
    %320 = vmatprep.subr.mxu0 0.0
    %321 = vmatpush2.msra.mxu0 0.0
    %322 = vmatprep.subr.mxu0 0.0
    %323 = vmatpush2.msra.mxu0 0.0
    %324 = vmatprep.subr.mxu0 0.0
    %325 = vmatpush2.msra.mxu0 0.0
    %326 = vmatprep.subr.mxu0 0.0
    %327 = vmatpush2.msra.mxu0 0.0
    %328 = vmatprep.subr.mxu0 0.0
    %329 = vmatpush2.msra.mxu0 0.0
    %330 = vmatprep.subr.mxu0 0.0
    %331 = vmatpush2.msra.mxu0 0.0
    %332 = vmatprep.subr.mxu0 0.0
    %333 = vmatpush2.msra.mxu0 0.0
    %334 = vmatprep.subr.mxu0 0.0
    %335 = vmatpush2.msra.mxu0 0.0
    %336 = vmatprep.subr.mxu0 0.0
    %337 = vmatpush2.msra.mxu0 0.0
    %338 = vmatprep.subr.mxu0 0.0
    %339 = vmatpush2.msra.mxu0 0.0
    %340 = vmatprep.subr.mxu0 0.0
    %341 = vmatpush2.msra.mxu0 0.0
    %342 = vmatprep.subr.mxu0 0.0
    %343 = vmatpush2.msra.mxu0 0.0
    %344 = vmatprep.mubr.f32.mxu0 0.0
    %345 = vmatmul.mubr.f32.gmra.mxu0 %v30
    %v346 = vpop.f32.mrf.mxu0
    %v347 = vadd.f32 0.0, %v346
    %v348 = vpop.f32.mrf.mxu0
    %349 = vmatprep.mubr.f32.mxu0 0.0
    %350 = vmatmul.mubr.f32.gmra.mxu0 %v33
    %v351 = vpop.f32.mrf.mxu0
    %v352 = vadd.f32 0.0, %v351
    %v353 = vpop.f32.mrf.mxu0
    %354 = vdwg.mxu0
    %s355 = scalar_lea.vmem [#allocation2], 16
    %356 = vst.msk [vmem:[%s355] sm:$0xff] %vm110, %v347
    %357 = vst.msk [vmem:[%s355 + $0x8] sm:$0xff] %vm110, %v352
    %s358 = scalar_lea.vmem %s2, 32
    %v359 = vld [vmem:[%s358] sm:$0xff]
    %v360 = vld [vmem:[%s358 + $0x8] sm:$0xff]
    %v361 = vld [vmem:[%s358 + $0x10] sm:$0xff]
    %v362 = vld [vmem:[%s358 + $0x18] sm:$0xff]
    %363 = vmatprep.subr.mxu0 0.0
    %364 = vmatpush1.msra.mxu0 0.0
    %365 = vmatprep.subr.mxu0 0.0
    %366 = vmatpush1.msra.mxu0 0.0
    %367 = vmatprep.subr.mxu0 0.0
    %368 = vmatpush1.msra.mxu0 0.0
    %369 = vmatprep.subr.mxu0 0.0
    %370 = vmatpush1.msra.mxu0 0.0
    %371 = vmatprep.subr.mxu0 0.0
    %372 = vmatpush1.msra.mxu0 0.0
    %373 = vmatprep.subr.mxu0 0.0
    %374 = vmatpush1.msra.mxu0 0.0
    %375 = vmatprep.subr.mxu0 0.0
    %376 = vmatpush1.msra.mxu0 0.0
    %377 = vmatprep.subr.mxu0 0.0
    %378 = vmatpush1.msra.mxu0 0.0
    %379 = vmatprep.subr.mxu0 0.0
    %380 = vmatpush1.msra.mxu0 0.0
    %381 = vmatprep.subr.mxu0 0.0
    %382 = vmatpush1.msra.mxu0 0.0
    %383 = vmatprep.subr.mxu0 0.0
    %384 = vmatpush1.msra.mxu0 0.0
    %385 = vmatprep.subr.mxu0 0.0
    %386 = vmatpush1.msra.mxu0 0.0
    %387 = vmatprep.subr.mxu0 0.0
    %388 = vmatpush1.msra.mxu0 %v362
    %389 = vmatprep.subr.mxu0 0.0
    %390 = vmatpush1.msra.mxu0 %v361
    %391 = vmatprep.subr.mxu0 0.0
    %392 = vmatpush1.msra.mxu0 %v360
    %393 = vmatprep.subr.mxu0 0.0
    %394 = vmatpush1.msra.mxu0 %v359
    %395 = vmatprep.subr.mxu0 0.0
    %396 = vmatpush2.msra.mxu0 0.0
    %397 = vmatprep.subr.mxu0 0.0
    %398 = vmatpush2.msra.mxu0 0.0
    %399 = vmatprep.subr.mxu0 0.0
    %400 = vmatpush2.msra.mxu0 0.0
    %401 = vmatprep.subr.mxu0 0.0
    %402 = vmatpush2.msra.mxu0 0.0
    %403 = vmatprep.subr.mxu0 0.0
    %404 = vmatpush2.msra.mxu0 0.0
    %405 = vmatprep.subr.mxu0 0.0
    %406 = vmatpush2.msra.mxu0 0.0
    %407 = vmatprep.subr.mxu0 0.0
    %408 = vmatpush2.msra.mxu0 0.0
    %409 = vmatprep.subr.mxu0 0.0
    %410 = vmatpush2.msra.mxu0 0.0
    %411 = vmatprep.subr.mxu0 0.0
    %412 = vmatpush2.msra.mxu0 0.0
    %413 = vmatprep.subr.mxu0 0.0
    %414 = vmatpush2.msra.mxu0 0.0
    %415 = vmatprep.subr.mxu0 0.0
    %416 = vmatpush2.msra.mxu0 0.0
    %417 = vmatprep.subr.mxu0 0.0
    %418 = vmatpush2.msra.mxu0 0.0
    %419 = vmatprep.subr.mxu0 0.0
    %420 = vmatpush2.msra.mxu0 0.0
    %421 = vmatprep.subr.mxu0 0.0
    %422 = vmatpush2.msra.mxu0 0.0
    %423 = vmatprep.subr.mxu0 0.0
    %424 = vmatpush2.msra.mxu0 0.0
    %425 = vmatprep.subr.mxu0 0.0
    %426 = vmatpush2.msra.mxu0 0.0
    %427 = vmatprep.mubr.f32.mxu0 0.0
    %428 = vmatmul.mubr.f32.gmra.mxu0 %v30
    %v429 = vpop.f32.mrf.mxu0
    %v430 = vadd.f32 0.0, %v429
    %v431 = vpop.f32.mrf.mxu0
    %432 = vmatprep.mubr.f32.mxu0 0.0
    %433 = vmatmul.mubr.f32.gmra.mxu0 %v33
    %v434 = vpop.f32.mrf.mxu0
    %v435 = vadd.f32 0.0, %v434
    %v436 = vpop.f32.mrf.mxu0
    %437 = vdwg.mxu0
    %s438 = scalar_lea.vmem [#allocation4], 16
    %439 = vst.msk [vmem:[%s438] sm:$0xff] %vm110, %v430
    %440 = vst.msk [vmem:[%s438 + $0x8] sm:$0xff] %vm110, %v435
    %s441 = scalar_lea.vmem %s3, 32
    %v442 = vld [vmem:[%s441] sm:$0xff]
    %v443 = vld [vmem:[%s441 + $0x8] sm:$0xff]
    %v444 = vld [vmem:[%s441 + $0x10] sm:$0xff]
    %v445 = vld [vmem:[%s441 + $0x18] sm:$0xff]
    %446 = vmatprep.subr.mxu0 0.0
    %447 = vmatpush1.msra.mxu0 0.0
    %448 = vmatprep.subr.mxu0 0.0
    %449 = vmatpush1.msra.mxu0 0.0
    %450 = vmatprep.subr.mxu0 0.0
    %451 = vmatpush1.msra.mxu0 0.0
    %452 = vmatprep.subr.mxu0 0.0
    %453 = vmatpush1.msra.mxu0 0.0
    %454 = vmatprep.subr.mxu0 0.0
    %455 = vmatpush1.msra.mxu0 0.0
    %456 = vmatprep.subr.mxu0 0.0
    %457 = vmatpush1.msra.mxu0 0.0
    %458 = vmatprep.subr.mxu0 0.0
    %459 = vmatpush1.msra.mxu0 0.0
    %460 = vmatprep.subr.mxu0 0.0
    %461 = vmatpush1.msra.mxu0 0.0
    %462 = vmatprep.subr.mxu0 0.0
    %463 = vmatpush1.msra.mxu0 0.0
    %464 = vmatprep.subr.mxu0 0.0
    %465 = vmatpush1.msra.mxu0 0.0
    %466 = vmatprep.subr.mxu0 0.0
    %467 = vmatpush1.msra.mxu0 0.0
    %468 = vmatprep.subr.mxu0 0.0
    %469 = vmatpush1.msra.mxu0 0.0
    %470 = vmatprep.subr.mxu0 0.0
    %471 = vmatpush1.msra.mxu0 %v445
    %472 = vmatprep.subr.mxu0 0.0
    %473 = vmatpush1.msra.mxu0 %v444
    %474 = vmatprep.subr.mxu0 0.0
    %475 = vmatpush1.msra.mxu0 %v443
    %476 = vmatprep.subr.mxu0 0.0
    %477 = vmatpush1.msra.mxu0 %v442
    %478 = vmatprep.subr.mxu0 0.0
    %479 = vmatpush2.msra.mxu0 0.0
    %480 = vmatprep.subr.mxu0 0.0
    %481 = vmatpush2.msra.mxu0 0.0
    %482 = vmatprep.subr.mxu0 0.0
    %483 = vmatpush2.msra.mxu0 0.0
    %484 = vmatprep.subr.mxu0 0.0
    %485 = vmatpush2.msra.mxu0 0.0
    %486 = vmatprep.subr.mxu0 0.0
    %487 = vmatpush2.msra.mxu0 0.0
    %488 = vmatprep.subr.mxu0 0.0
    %489 = vmatpush2.msra.mxu0 0.0
    %490 = vmatprep.subr.mxu0 0.0
    %491 = vmatpush2.msra.mxu0 0.0
    %492 = vmatprep.subr.mxu0 0.0
    %493 = vmatpush2.msra.mxu0 0.0
    %494 = vmatprep.subr.mxu0 0.0
    %495 = vmatpush2.msra.mxu0 0.0
    %496 = vmatprep.subr.mxu0 0.0
    %497 = vmatpush2.msra.mxu0 0.0
    %498 = vmatprep.subr.mxu0 0.0
    %499 = vmatpush2.msra.mxu0 0.0
    %500 = vmatprep.subr.mxu0 0.0
    %501 = vmatpush2.msra.mxu0 0.0
    %502 = vmatprep.subr.mxu0 0.0
    %503 = vmatpush2.msra.mxu0 0.0
    %504 = vmatprep.subr.mxu0 0.0
    %505 = vmatpush2.msra.mxu0 0.0
    %506 = vmatprep.subr.mxu0 0.0
    %507 = vmatpush2.msra.mxu0 0.0
    %508 = vmatprep.subr.mxu0 0.0
    %509 = vmatpush2.msra.mxu0 0.0
    %510 = vmatprep.mubr.f32.mxu0 0.0
    %511 = vmatmul.mubr.f32.gmra.mxu0 %v30
    %v512 = vpop.f32.mrf.mxu0
    %v513 = vadd.f32 0.0, %v512
    %v514 = vpop.f32.mrf.mxu0
    %515 = vmatprep.mubr.f32.mxu0 0.0
    %516 = vmatmul.mubr.f32.gmra.mxu0 %v33
    %v517 = vpop.f32.mrf.mxu0
    %v518 = vadd.f32 0.0, %v517
    %v519 = vpop.f32.mrf.mxu0
    %520 = vdwg.mxu0
    %s521 = scalar_lea.vmem [#allocation6], 16
    %522 = vst.msk [vmem:[%s521] sm:$0xff] %vm110, %v513
    %523 = vst.msk [vmem:[%s521 + $0x8] sm:$0xff] %vm110, %v518
    // Predicated region
    $region18: #{tpu_custom_call.1} parent=1 // pred_check
      _
    $region19: #{tpu_custom_call.1} parent=1 // pred_check_branch
      %525 = sbr.rel (0) target = $region21
    $region20: #{tpu_custom_call.1} parent=1 // pred_region
      %s527 = ssub.s32 512, 512
      %528 = vsyncadd [#allocation3], %s527
      %s529 = sshll.u32 [#allocation2], 4
      %s530 = int_to_ptr.vmem [resolvable:$true] %s529
      %535 = dma.vmem_to_hbm [thread:$0]  %s530, 512, %s4, [#allocation3], 128, 128, 8
    $region21: #{tpu_custom_call.1} parent=1 // pred_fallthru
      _
    // Predicated region
    $region22: #{tpu_custom_call.1} parent=1 // pred_check
      _
    $region23: #{tpu_custom_call.1} parent=1 // pred_check_branch
      %537 = sbr.rel (0) target = $region25
    $region24: #{tpu_custom_call.1} parent=1 // pred_region
      %s539 = ssub.s32 512, 512
      %540 = vsyncadd [#allocation5], %s539
      %s541 = sshll.u32 [#allocation4], 4
      %s542 = int_to_ptr.vmem [resolvable:$true] %s541
      %547 = dma.vmem_to_hbm [thread:$0]  %s542, 512, %s5, [#allocation5], 128, 128, 8
    $region25: #{tpu_custom_call.1} parent=1 // pred_fallthru
      _
    // Predicated region
    $region26: #{tpu_custom_call.1} parent=1 // pred_check
      _
    $region27: #{tpu_custom_call.1} parent=1 // pred_check_branch
      %549 = sbr.rel (0) target = $region29
    $region28: #{tpu_custom_call.1} parent=1 // pred_region
      %s551 = ssub.s32 512, 512
      %552 = vsyncadd [#allocation5], %s551
      %s553 = sshll.u32 [#allocation6], 4
      %s554 = int_to_ptr.vmem [resolvable:$true] %s553
      %559 = dma.vmem_to_hbm [thread:$0]  %s554, 512, %s6, [#allocation5], 128, 128, 8
    $region29: #{tpu_custom_call.1} parent=1 // pred_fallthru
      _
    // Predicated region
    $region30: #{tpu_custom_call.1} parent=1 // pred_check
      _
    $region31: #{tpu_custom_call.1} parent=1 // pred_check_branch
      %561 = sbr.rel (0) target = $region33
    $region32: #{tpu_custom_call.1} parent=1 // pred_region
      %562 = dma.done [#allocation3], 512
    $region33: #{tpu_custom_call.1} parent=1 // pred_fallthru
      _
    // Predicated region
    $region34: #{tpu_custom_call.1} parent=1 // pred_check
      _
    $region35: #{tpu_custom_call.1} parent=1 // pred_check_branch
      %564 = sbr.rel (0) target = $region37
    $region36: #{tpu_custom_call.1} parent=1 // pred_region
      %565 = dma.done [#allocation5], 512
    $region37: #{tpu_custom_call.1} parent=1 // pred_fallthru
      _
    // Predicated region
    $region38: #{tpu_custom_call.1} parent=1 // pred_check
      _
    $region39: #{tpu_custom_call.1} parent=1 // pred_check_branch
      %567 = sbr.rel (0) target = $region41
    $region40: #{tpu_custom_call.1} parent=1 // pred_region
      %568 = dma.done [#allocation5], 512
    $region41: #{tpu_custom_call.1} parent=1 // pred_fallthru
      _
    %569 = vsyncpa [#allocation3], 1
    %570 = vsyncpa [#allocation5], 1

</llo_original>
